<compile_context>
chip_gen: v7x
topology: tpu7x:2x2x1
jax: 0.10.0
libtpu: 0.0.40
codegen_flags: <defaults>
</compile_context>

<pallas_src>
import jax
import jax.numpy as jnp
from jax.experimental import pallas as pl
from jax.experimental.pallas import tpu as pltpu


def _round_up(x, m):
    return ((x + m - 1) // m) * m


def _pick_block(dim_padded, desired, align=128):
    """Largest multiple of `align` <= desired that divides dim_padded (a multiple of align)."""
    t = min(desired, dim_padded)
    t = max(align, (t // align) * align)
    while dim_padded % t != 0:
        t -= align
    return t


def _vmem_budget_bytes():
    """~75% of this chip's VMEM (64 MiB on v7x, 128 MiB on v5e/v6e)."""
    try:
        cap = int(pltpu.get_tpu_info().vmem_capacity_bytes)
    except Exception:
        cap = 64 * 1024 * 1024
    return max(32 * 1024 * 1024, (cap * 3) // 4)


# ----------------------------------------------------------------------------
# Pallas kernel: one (tm, tn) f32 logits tile, reduced over K tiles of hidden.
# The output BlockSpec ignores k, so o_ref is resident in VMEM across the whole
# K reduction (K is the LAST, "arbitrary" grid axis).  Bias is written exactly
# once (k==0 init), then every K step accumulates a bf16 MXU matmul in f32.
# ----------------------------------------------------------------------------
def lm_head_kernel(h_ref, w_ref, b_ref, o_ref):
    @pl.when(pl.program_id(2) == 0)
    def _init():
        o_ref[...] = jnp.broadcast_to(b_ref[...], o_ref.shape)

    o_ref[...] += jnp.dot(h_ref[...], w_ref[...],
                          preferred_element_type=jnp.float32)


# ----------------------------------------------------------------------------
# One-time parameter preparation (hoisted out of the per-call path).
# ----------------------------------------------------------------------------
def prepare_lm_head(w, b):
    """Cast LM-head weight to bf16 and pad H/V to 128 multiples; bias -> [1, Vp] f32."""
    H, V = w.shape
    assert b.shape == (V,)
    Hp, Vp = _round_up(H, 128), _round_up(V, 128)
    w_p = jnp.pad(w.astype(jnp.bfloat16), ((0, Hp - H), (0, Vp - V)))
    b_p = jnp.pad(b.astype(jnp.float32), (0, Vp - V)).reshape(1, Vp)
    return {"w": w_p, "b": b_p, "H": H, "V": V}


def lm_head_pallas(hidden, head, *, tm=512, tn=2048, tk=2048, force_pallas=False):
    """logits = hidden @ W + b, f32 output.

    hidden: [M, H] (any float dtype, cast to bf16); head: prepare_lm_head(...) dict.
    """
    M, H = hidden.shape
    w_p, b_p = head["w"], head["b"]
    Hp, Vp = w_p.shape
    V = head["V"]
    assert H == head["H"]

    # Small-problem escape hatch: below a few MFLOP the pad/launch overhead
    # dominates; let XLA fuse the dot + bias instead.
    if not force_pallas and M * Hp * Vp < (1 << 22):
        return (jnp.dot(hidden.astype(jnp.bfloat16), w_p[:H, :V],
                        preferred_element_type=jnp.float32) + b_p[0, :V])

    # ---- Tile selection (no over-padding of small dims) ---------------------
    Mp0 = _round_up(M, 8)                 # sublane alignment only
    tm = min(tm, Mp0)
    Mp = _round_up(M, tm)                 # at most one partial M tile of padding
    tk = _pick_block(Hp, tk)              # divisors of the (128-aligned) padded dims
    tn = _pick_block(Vp, tn)

    # v7x dual-TensorCore: keep >=2 blocks on a parallel axis (split V for small M).
    if Mp // tm == 1 and Vp // tn == 1 and Vp >= 256:
        tn = _pick_block(Vp, max(128, tn // 2))

    # ---- Fit the double-buffered footprint under this chip's VMEM budget ----
    budget = _vmem_budget_bytes()

    def footprint(tm_, tn_, tk_):
        return 2 * (tm_ * tk_ * 2 + tk_ * tn_ * 2 + tm_ * tn_ * 4) + 2 * tn_ * 4

    while footprint(tm, tn, tk) > budget:
        if tk > 128:
            tk = _pick_block(Hp, tk // 2)
        elif tn > 128:
            tn = _pick_block(Vp, tn // 2)
        elif tm > 8:
            tm = max(8, (tm // 2 // 8) * 8)
            Mp = _round_up(M, tm)
        else:
            break

    # Hidden is an activation (computed fresh each call), so its bf16 cast + small
    # pad stays in the call path; zero-padding along K adds nothing to the sum.
    h_p = jnp.pad(hidden.astype(jnp.bfloat16), ((0, Mp - M), (0, Hp - H)))

    grid = (Mp // tm, Vp // tn, Hp // tk)   # K (reduction) is the LAST grid axis.

    out_p = pl.pallas_call(
        lm_head_kernel,
        out_shape=jax.ShapeDtypeStruct((Mp, Vp), jnp.float32),
        grid=grid,
        in_specs=[
            pl.BlockSpec((tm, tk), lambda i, j, k: (i, k)),   # hidden tile (bf16)
            pl.BlockSpec((tk, tn), lambda i, j, k: (k, j)),   # weight tile (bf16)
            pl.BlockSpec((1, tn), lambda i, j, k: (0, j)),    # bias strip (f32)
        ],
        out_specs=pl.BlockSpec((tm, tn), lambda i, j, k: (i, j)),
        compiler_params=pltpu.CompilerParams(
            dimension_semantics=("parallel", "parallel", "arbitrary"),
            vmem_limit_bytes=int(budget),
        ),
    )(h_p, w_p, b_p)

    # TODO(synk): offer a bf16/consumer-dtype output (or fuse softmax/sampling)
    # to halve the [M, V] writeback for large M*V; kept f32 here for parity.
    return out_p[:M, :V]


# ----------------------------------------------------------------------------
# Synthetic inner model (what `self.model` would be in the PyTorch code):
# returns a tuple whose first element is the logits tensor.
# ----------------------------------------------------------------------------
def make_params(key, vocab=256, hidden=32):
    k_emb, k_w, k_b = jax.random.split(key, 3)
    emb = jax.random.normal(k_emb, (vocab, hidden), jnp.float32) * 0.02
    w = jax.random.normal(k_w, (hidden, vocab), jnp.float32) * 0.02
    b = jax.random.normal(k_b, (vocab,), jnp.float32) * 0.02
    params = {
        "embedding": emb.astype(jnp.bfloat16),   # activations hit the MXU in bf16 anyway
        "lm_head": prepare_lm_head(w, b),        # one-time cast/pad, not per-call
    }
    raw = {"embedding": emb, "w_out": w, "b_out": b}
    return params, raw


def inner_model(params, input_ids, *, force_pallas=False):
    B, S = input_ids.shape
    V = params["lm_head"]["V"]
    H = params["embedding"].shape[1]
    # TODO(synk): for prefill-scale M, fuse this gather into the kernel via
    # PrefetchScalarGridSpec token ids + a pl.Element row-gather BlockSpec;
    # negligible benefit at M=16.
    hidden = params["embedding"][input_ids]          # [B, S, H] bf16
    hidden_flat = hidden.reshape(B * S, H)           # [B*S, H]
    logits_flat = lm_head_pallas(hidden_flat, params["lm_head"],
                                 force_pallas=force_pallas)
    logits = logits_flat.reshape(B, S, V)            # [B, S, V]
    return (logits, hidden)                          # tuple, like HF models


def wrap_model_forward(params, input_ids, *, force_pallas=False):
    """Pallas/JAX equivalent of WrapModel.forward: return outputs[0]."""
    outputs = inner_model(params, input_ids, force_pallas=force_pallas)
    return outputs[0]


if __name__ == "__main__":
    key = jax.random.PRNGKey(0)
    k_params, k_ids = jax.random.split(key)

    batch, seq, vocab, hidden = 2, 8, 256, 32
    params, raw = make_params(k_params, vocab=vocab, hidden=hidden)
    input_ids = jax.random.randint(k_ids, (batch, seq), 0, vocab, dtype=jnp.int32)

    # Force the Pallas path so the kernel itself is exercised at this toy size
    # (production callers at this size would take the XLA escape hatch).
    out = wrap_model_forward(params, input_ids, force_pallas=True)
    out = jax.block_until_ready(out)

    # Reference: same bf16-operand / f32-accumulation math in plain JAX.
    h_flat = raw["embedding"][input_ids].reshape(batch * seq, hidden)
    ref = (h_flat.astype(jnp.bfloat16).astype(jnp.float32)
           @ raw["w_out"].astype(jnp.bfloat16).astype(jnp.float32)
           + raw["b_out"]).reshape(batch, seq, vocab)

    assert out.shape == (batch, seq, vocab)
    assert jnp.allclose(out, ref, atol=1e-3, rtol=1e-3)

    print("KERNEL_OK")
</pallas_src>

<mosaic_0001>
module attributes {stable_mosaic.version = 11 : i64} {
  func.func @lm_head_kernel(%arg0: i32, %arg1: i32, %arg2: i32, %arg3: memref<16x128xbf16, #tpu.memory_space<vmem>>, %arg4: memref<128x128xbf16, #tpu.memory_space<vmem>>, %arg5: memref<1x128xf32, #tpu.memory_space<vmem>>, %arg6: memref<16x128xf32, #tpu.memory_space<vmem>>) attributes {dimension_semantics = [#tpu.dimension_semantics<parallel>, #tpu.dimension_semantics<parallel>, #tpu.dimension_semantics<arbitrary>], iteration_bounds = array<i64: 1, 2, 1>, scalar_prefetch = 0 : i64, scratch_operands = 0 : i64, tpu.core_type = #tpu.core_type<tc>, window_params = [{transform_indices = @transform_0, window_bounds = array<i64: 16, 128>}, {transform_indices = @transform_1, window_bounds = array<i64: 128, 128>}, {transform_indices = @transform_2, window_bounds = array<i64: 1, 128>}, {transform_indices = @transform_3, window_bounds = array<i64: 16, 128>}]} {
    %c0_i32 = arith.constant 0 : i32
    %0 = arith.cmpi eq, %arg2, %c0_i32 : i32
    %1 = arith.extui %0 : i1 to i32
    %c0_i32_0 = arith.constant 0 : i32
    %2 = arith.cmpi ne, %1, %c0_i32_0 : i32
    scf.if %2 {
      %c0_8 = arith.constant 0 : index
      %c0_9 = arith.constant 0 : index
      %9 = vector.load %arg5[%c0_8, %c0_9] : memref<1x128xf32, #tpu.memory_space<vmem>>, vector<1x128xf32>
      %10 = vector.shape_cast %9 : vector<1x128xf32> to vector<1x128xf32>
      %11 = vector.broadcast %10 : vector<1x128xf32> to vector<16x128xf32>
      %c0_10 = arith.constant 0 : index
      %c0_11 = arith.constant 0 : index
      %12 = vector.load %arg6[%c0_10, %c0_11] : memref<16x128xf32, #tpu.memory_space<vmem>>, vector<16x128xf32>
      tpu.vector_store %arg6[%c0_10, %c0_11], %11 {strides = array<i32>} : memref<16x128xf32, #tpu.memory_space<vmem>>, vector<16x128xf32>,
    } else {
    }
    %c0 = arith.constant 0 : index
    %c0_1 = arith.constant 0 : index
    %3 = vector.load %arg6[%c0, %c0_1] : memref<16x128xf32, #tpu.memory_space<vmem>>, vector<16x128xf32>
    %c0_2 = arith.constant 0 : index
    %c0_3 = arith.constant 0 : index
    %4 = vector.load %arg3[%c0_2, %c0_3] : memref<16x128xbf16, #tpu.memory_space<vmem>>, vector<16x128xbf16>
    %c0_4 = arith.constant 0 : index
    %c0_5 = arith.constant 0 : index
    %5 = vector.load %arg4[%c0_4, %c0_5] : memref<128x128xbf16, #tpu.memory_space<vmem>>, vector<128x128xbf16>
    %cst = arith.constant dense<0.000000e+00> : vector<16x128xf32>
    %6 = tpu.matmul %4, %5, %cst {dimension_numbers = #tpu.dot_dimension_numbers<[1], [0], [0], [1], [0, 0, 1, 1], [], []>} : vector<16x128xbf16>, vector<128x128xbf16>, vector<16x128xf32> -> vector<16x128xf32>
    %7 = arith.addf %3, %6 : vector<16x128xf32>
    %c0_6 = arith.constant 0 : index
    %c0_7 = arith.constant 0 : index
    %8 = vector.load %arg6[%c0_6, %c0_7] : memref<16x128xf32, #tpu.memory_space<vmem>>, vector<16x128xf32>
    tpu.vector_store %arg6[%c0_6, %c0_7], %7 {strides = array<i32>} : memref<16x128xf32, #tpu.memory_space<vmem>>, vector<16x128xf32>,
    return
  }
  func.func @transform_0(%arg0: i32, %arg1: i32, %arg2: i32) -> (i32, i32) {
    %c0_i32 = arith.constant 0 : i32
    return %arg0, %arg2 : i32, i32
  }
  func.func @transform_1(%arg0: i32, %arg1: i32, %arg2: i32) -> (i32, i32) {
    %c0_i32 = arith.constant 0 : i32
    return %arg2, %arg1 : i32, i32
  }
  func.func @transform_2(%arg0: i32, %arg1: i32, %arg2: i32) -> (i32, i32) {
    %c0_i32 = arith.constant 0 : i32
    %c0_i32_0 = arith.constant 0 : i32
    return %c0_i32, %arg1 : i32, i32
  }
  func.func @transform_3(%arg0: i32, %arg1: i32, %arg2: i32) -> (i32, i32) {
    %c0_i32 = arith.constant 0 : i32
    return %arg0, %arg1 : i32, i32
  }
}

</mosaic_0001>

<llo_original>
// kernel: tpu_custom_call.1
$region0: #{tpu_custom_call.1}
  #allocation0 [shape = 'u32[]', space=smem, size = 0x4, offset = 0x4, fixed_abs, tag = 'smem constant byte address 0x4 - core index']
  #allocation1 [shape = 'u32[144,128]{1,0:T(1,128)}', space=vmem, size = 0x12000, scoped, tag = 'internal scratch']
  %s0 = inlined_call_operand.hbm [shape: bf16[16,128], index: 0, kind: input, shape index: {}]
  %s1 = inlined_call_operand.hbm [shape: bf16[128,256], index: 1, kind: input, shape index: {}]
  %s2 = inlined_call_operand.vmem [shape: f32[1,256], index: 2, kind: input, shape index: {}]
  %s3 = inlined_call_operand.hbm [shape: f32[16,256], index: 3, kind: output, shape index: {}]
  %s4 = sld [smem:[#allocation0]]
  $region57: #{tpu_custom_call.1} parent=0
    _
  %s6 = ssub.s32 1, %s4
  %s7 = scalar_select 0, %s6, %s4
  $region1: #{tpu_custom_call.1} parent=0
    #allocation2 [shape = 'u8[4096]{0}', space=vmem, size = 0x1000, scoped, tag = 'input window, operand 0, single buffered']
    #allocation3 [shape = 's32[2]{0}', space=sflag, size = 0x8, scoped, tag = 'scoped memory for tpu_custom_call.1']
    #allocation4 [shape = 's32[2]{0}', space=sflag, size = 0x8, scoped, tag = 'scoped memory for tpu_custom_call.1']
    #allocation5 [shape = 'u8[65536]{0}', space=vmem, size = 0x10000, scoped, tag = 'input window, operand 1']
    #allocation6 [shape = 's32[2]{0}', space=sflag, size = 0x8, scoped, tag = 'scoped memory for tpu_custom_call.1']
    #allocation7 [shape = 'u8[16384]{0}', space=vmem, size = 0x4000, scoped, tag = 'output window, operand 0']
    %8 = vsyncpa [#allocation3], 0
    %9 = vsyncpa [#allocation6], 0
    %s10 = scalar_lea.sflag [#allocation6], 1
    %11 = vsyncpa %s10, 0
    %12 = vsyncpa [#allocation4], 0
    %s13 = scalar_lea.sflag [#allocation4], 1
    %14 = vsyncpa %s13, 0
    loop: start=0, step=1, limit=4
    $region2: #{tpu_custom_call.1} parent=1 // loop_pre_header
      _
    $region3: #{tpu_custom_call.1} parent=1 // loop_header
      %s16 = sphi 0, %s20
      %p17 = scmp.ge.s32.totalorder %s16, 4
      %s23 = sphi 0, %s42
      %s24 = sphi 0, %s38
      %s25 = sphi 0, %s34
      %s26 = sphi 0, %s23
      %s27 = sphi 0, %s24
      %s28 = sphi 0, %s25
      %s29 = sphi 0, %s26
      %s30 = sphi 0, %s27
      %s31 = sphi 0, %s28
      %s47 = sphi 0, %s49
      %s50 = sphi 0, %s47
      %s51 = sphi 0, %s50
      %s67 = sphi 0, %s51
      %s75 = sphi 0, %s77
      %s78 = sphi 0, %s75
      %s79 = sphi 0, %s78
      %s95 = sphi 0, %s79
      %s101 = sphi 0, %s103
      %s104 = sphi 0, %s101
      %s105 = sphi 0, %s104
      %s121 = sphi 0, %s105
      %s129 = sphi 0, %s131
      %s132 = sphi 0, %s129
      %s133 = sphi 0, %s132
      %s149 = sphi 0, %s133
    $region4: #{tpu_custom_call.1} parent=1 // loop_header_branch
      %19 = sbr.rel (%p17) target = $region8
    $region5: #{tpu_custom_call.1} parent=1 // loop_body
      %s21 = ssub.s32 %s16, 1
      %s22 = ssub.s32 %s16, 2
      %s32 = sadd.s32 1, %s25
      %p33 = scmp.ge.s32.totalorder %s32, 1
      %s34 = scalar_select %p33, 0, %s32
      %s35 = sadd.s32 1, %s24
      %s36 = scalar_select %p33, %s35, %s24
      %p37 = scmp.ge.s32.totalorder %s36, 2
      %s38 = scalar_select %p37, 0, %s36
      %s39 = sadd.s32 1, %s23
      %s40 = scalar_select %p37, %s39, %s23
      %p41 = scmp.ge.s32.totalorder %s40, 1
      %s42 = scalar_select %p41, 0, %s40
      %s43 = ssub.s32 %s23, %s42
      %s44 = ssub.s32 %s25, %s34
      %s45 = sor.u32 %s43, %s44
      %p46 = scmp.eq.s32.totalorder %s45, 0
      %s48 = sadd.s32 %s47, 1
      %s49 = scalar_select %p46, %s47, %s48
      %p52 = pneg %p46
      %p53 = scmp.eq.s32.totalorder %s16, 1
      %p54 = por %p52, %p53
      %p55 = scmp.ne.s32.totalorder %s47, %s50
      %p56 = scmp.eq.s32.totalorder %s16, 0
      %p57 = por %p55, %p56
      %p58 = scmp.ne.s32.totalorder %s47, %s50
      %p59 = scmp.eq.s32.totalorder %s21, 1
      %p60 = por %p58, %p59
      %p61 = scmp.ne.s32.totalorder %s50, %s51
      %p62 = scmp.eq.s32.totalorder %s21, 0
      %p63 = por %p61, %p62
      %p64 = scmp.ne.s32.totalorder %s50, %s51
      %p65 = scmp.eq.s32.totalorder %s22, 1
      %p66 = por %p64, %p65
      %p68 = scmp.ne.s32.totalorder %s51, %s67
      %p69 = scmp.eq.s32.totalorder %s22, 0
      %p70 = por %p68, %p69
      %s71 = ssub.s32 %s25, %s34
      %s72 = ssub.s32 %s24, %s38
      %s73 = sor.u32 %s71, %s72
      %p74 = scmp.eq.s32.totalorder %s73, 0
      %s76 = sadd.s32 %s75, 1
      %s77 = scalar_select %p74, %s75, %s76
      %p80 = pneg %p74
      %p81 = scmp.eq.s32.totalorder %s16, 1
      %p82 = por %p80, %p81
      %p83 = scmp.ne.s32.totalorder %s75, %s78
      %p84 = scmp.eq.s32.totalorder %s16, 0
      %p85 = por %p83, %p84
      %p86 = scmp.ne.s32.totalorder %s75, %s78
      %p87 = scmp.eq.s32.totalorder %s21, 1
      %p88 = por %p86, %p87
      %p89 = scmp.ne.s32.totalorder %s78, %s79
      %p90 = scmp.eq.s32.totalorder %s21, 0
      %p91 = por %p89, %p90
      %p92 = scmp.ne.s32.totalorder %s78, %s79
      %p93 = scmp.eq.s32.totalorder %s22, 1
      %p94 = por %p92, %p93
      %p96 = scmp.ne.s32.totalorder %s79, %s95
      %p97 = scmp.eq.s32.totalorder %s22, 0
      %p98 = por %p96, %p97
      %s99 = ssub.s32 %s24, %s38
      %p100 = scmp.eq.s32.totalorder %s99, 0
      %s102 = sadd.s32 %s101, 1
      %s103 = scalar_select %p100, %s101, %s102
      %p106 = pneg %p100
      %p107 = scmp.eq.s32.totalorder %s16, 1
      %p108 = por %p106, %p107
      %p109 = scmp.ne.s32.totalorder %s101, %s104
      %p110 = scmp.eq.s32.totalorder %s16, 0
      %p111 = por %p109, %p110
      %p112 = scmp.ne.s32.totalorder %s101, %s104
      %p113 = scmp.eq.s32.totalorder %s21, 1
      %p114 = por %p112, %p113
      %p115 = scmp.ne.s32.totalorder %s104, %s105
      %p116 = scmp.eq.s32.totalorder %s21, 0
      %p117 = por %p115, %p116
      %p118 = scmp.ne.s32.totalorder %s104, %s105
      %p119 = scmp.eq.s32.totalorder %s22, 1
      %p120 = por %p118, %p119
      %p122 = scmp.ne.s32.totalorder %s105, %s121
      %p123 = scmp.eq.s32.totalorder %s22, 0
      %p124 = por %p122, %p123
      %s125 = ssub.s32 %s23, %s42
      %s126 = ssub.s32 %s24, %s38
      %s127 = sor.u32 %s125, %s126
      %p128 = scmp.eq.s32.totalorder %s127, 0
      %s130 = sadd.s32 %s129, 1
      %s131 = scalar_select %p128, %s129, %s130
      %p134 = pneg %p128
      %p135 = scmp.eq.s32.totalorder %s16, 1
      %p136 = por %p134, %p135
      %p137 = scmp.ne.s32.totalorder %s129, %s132
      %p138 = scmp.eq.s32.totalorder %s16, 0
      %p139 = por %p137, %p138
      %p140 = scmp.ne.s32.totalorder %s129, %s132
      %p141 = scmp.eq.s32.totalorder %s21, 1
      %p142 = por %p140, %p141
      %p143 = scmp.ne.s32.totalorder %s132, %s133
      %p144 = scmp.eq.s32.totalorder %s21, 0
      %p145 = por %p143, %p144
      %p146 = scmp.ne.s32.totalorder %s132, %s133
      %p147 = scmp.eq.s32.totalorder %s22, 1
      %p148 = por %p146, %p147
      %p150 = scmp.ne.s32.totalorder %s133, %s149
      %p151 = scmp.eq.s32.totalorder %s22, 0
      %p152 = por %p150, %p151
      %p153 = scmp.le.s32.totalorder 1, %s16
      %p154 = scmp.lt.s32.totalorder %s16, 3
      %p155 = pnand %p153, %p154
      %p156 = pneg %p155
      // Predicated region
      $region9: #{tpu_custom_call.1} parent=5 // pred_check
        _
      $region10: #{tpu_custom_call.1} parent=5 // pred_check_branch
        %158 = sbr.rel (%p155) target = $region12
      $region11: #{tpu_custom_call.1} parent=5 // pred_region
        %s159 = ssub.s32 %s16, 1
        // Predicated region
        $region13: #{tpu_custom_call.1} parent=11 // pred_check
          %p160 = pneg %p63
        $region14: #{tpu_custom_call.1} parent=11 // pred_check_branch
          %162 = sbr.rel (%p160) target = $region16
        $region15: #{tpu_custom_call.1} parent=11 // pred_region
          %s163 = smul.u32 2, %s26
          %s165 = ssub.s32 128, 128
          %166 = vsyncadd [#allocation3], %s165
          %s167 = sadd.s32 %s28, %s163
          %s168 = smul.addr %s167, 64
          %s169 = scalar_lea.hbm %s0, %s168
          %s170 = sshll.u32 [#allocation2], 4
          %s171 = int_to_ptr.vmem [resolvable:$true] %s170
          %176 = dma.hbm_to_vmem [thread:$0]  %s169, 128, %s171, [#allocation3], 64, 64, 4
        $region16: #{tpu_custom_call.1} parent=11 // pred_fallthru
          _
      $region12: #{tpu_custom_call.1} parent=5 // pred_fallthru
        _
      %p177 = scmp.lt.s32.totalorder %s16, 2
      // Predicated region
      $region17: #{tpu_custom_call.1} parent=5 // pred_check
        %p178 = pneg %p177
      $region18: #{tpu_custom_call.1} parent=5 // pred_check_branch
        %180 = sbr.rel (%p178) target = $region20
      $region19: #{tpu_custom_call.1} parent=5 // pred_region
        // Predicated region
        $region21: #{tpu_custom_call.1} parent=19 // pred_check
          %p181 = pneg %p85
        $region22: #{tpu_custom_call.1} parent=19 // pred_check_branch
          %183 = sbr.rel (%p181) target = $region24
        $region23: #{tpu_custom_call.1} parent=19 // pred_region
          %s184 = sand.u32 %s75, 1
          %s185 = scalar_lea.sflag [#allocation6], %s184
          %s186 = sand.u32 %s75, 1
          %s187 = smul.addr %s186, 64
          %s188 = scalar_lea.vmem [#allocation5], %s187
          %s189 = smul.u32 16, %s25
          %s191 = ssub.s32 1024, 1024
          %192 = vsyncadd %s185, %s191
          %s193 = smul.addr %s189, 2
          %s194 = sadd.s32 %s24, %s193
          %s195 = smul.addr %s194, 64
          %s196 = scalar_lea.hbm %s1, %s195
          %s197 = sshll.u32 %s188, 4
          %s198 = int_to_ptr.vmem [resolvable:$true] %s197
          %203 = dma.hbm_to_vmem [thread:$0]  %s196, 1024, %s198, %s185, 128, 64, 4
        $region24: #{tpu_custom_call.1} parent=19 // pred_fallthru
          _
        // Predicated region
        $region25: #{tpu_custom_call.1} parent=19 // pred_check
          %p204 = pneg %p111
        $region26: #{tpu_custom_call.1} parent=19 // pred_check_branch
          %206 = sbr.rel (%p204) target = $region28
        $region27: #{tpu_custom_call.1} parent=19 // pred_region
          %p207 = scmp.lt.s32.totalorder %s24, 1
          %s208 = scalar_select %p207, %s24, 1
          %s209 = scalar_lea.vmem %s2, %s208
        $region28: #{tpu_custom_call.1} parent=19 // pred_fallthru
          _
      $region20: #{tpu_custom_call.1} parent=5 // pred_fallthru
        _
      %p210 = scmp.le.s32.totalorder 1, %s16
      %p211 = scmp.lt.s32.totalorder %s16, 3
      %p212 = pnand %p210, %p211
      %p213 = pneg %p212
      // Predicated region
      $region29: #{tpu_custom_call.1} parent=5 // pred_check
        _
      $region30: #{tpu_custom_call.1} parent=5 // pred_check_branch
        %215 = sbr.rel (%p212) target = $region32
      $region31: #{tpu_custom_call.1} parent=5 // pred_region
        %s216 = ssub.s32 %s16, 1
        // Predicated region
        $region33: #{tpu_custom_call.1} parent=31 // pred_check
          %p217 = pneg %p63
        $region34: #{tpu_custom_call.1} parent=31 // pred_check_branch
          %219 = sbr.rel (%p217) target = $region36
        $region35: #{tpu_custom_call.1} parent=31 // pred_region
          %220 = dma.done [#allocation3], 128
        $region36: #{tpu_custom_call.1} parent=31 // pred_fallthru
          _
        %s221 = sand.u32 %s78, 1
        %s222 = scalar_lea.sflag [#allocation6], %s221
        %s223 = sand.u32 %s78, 1
        %s224 = smul.addr %s223, 64
        %s225 = scalar_lea.vmem [#allocation5], %s224
        // Predicated region
        $region37: #{tpu_custom_call.1} parent=31 // pred_check
          %p226 = pneg %p91
        $region38: #{tpu_custom_call.1} parent=31 // pred_check_branch
          %228 = sbr.rel (%p226) target = $region40
        $region39: #{tpu_custom_call.1} parent=31 // pred_region
          %229 = dma.done %s222, 1024
        $region40: #{tpu_custom_call.1} parent=31 // pred_fallthru
          _
        %p230 = pneg %p63
        %p231 = pneg %p60
        %s232 = sand.u32 %s78, 1
        %s233 = scalar_lea.sflag [#allocation6], %s232
        %s234 = sand.u32 %s78, 1
        %s235 = smul.addr %s234, 64
        %s236 = scalar_lea.vmem [#allocation5], %s235
        %p237 = pneg %p91
        %p238 = pneg %p88
        %p239 = scmp.lt.s32.totalorder %s27, 1
        %s240 = scalar_select %p239, %s27, 1
        %s241 = scalar_lea.vmem %s2, %s240
        %p242 = pneg %p117
        %p243 = pneg %p114
        %p244 = pneg %p145
        %p245 = pneg %p142
        %s246 = sand.u32 %s132, 1
        %s247 = scalar_lea.sflag [#allocation4], %s246
        %s248 = sand.u32 %s132, 1
        %s249 = smul.addr %s248, 16
        %s250 = scalar_lea.vmem [#allocation7], %s249
        %s251 = smul.u32 2, %s26
        %s252 = smul.u32 16, %s28
        %p253 = scmp.lt.s32.totalorder %s27, 1
        %s254 = scalar_select %p253, %s27, 1
        %s255 = scalar_lea.vmem %s2, %s254
        %s256 = smul.u32 2, %s26
        %p258 = scmp.eq.s32.totalorder %s28, 0
        // Predicated region
        $region41: #{tpu_custom_call.1} parent=31 // pred_check
          %p259 = pneg %p258
        $region42: #{tpu_custom_call.1} parent=31 // pred_check_branch
          %261 = sbr.rel (%p259) target = $region44
        $region43: #{tpu_custom_call.1} parent=31 // pred_region
          %v262 = vld [vmem:[%s255] sm:$0x1]
          %v264 = vlaneseq
          %v265 = vshrl.u32 %v264, 7
          %v266 = vsub.s32 0, %v265
          %v267 = vrot.slane %v262, %v266
          %269 = vst [vmem:[%s250] sm:$0xff] %v267
          %270 = vst [vmem:[%s250 + $0x8] sm:$0xff] %v267
        $region44: #{tpu_custom_call.1} parent=31 // pred_fallthru
          _
        %v271 = vld [vmem:[%s250] sm:$0xff]
        %v272 = vld [vmem:[%s250 + $0x8] sm:$0xff]
        %v273 = vld [vmem:[#allocation2] sm:$0xf]
        %v274 = vld [vmem:[#allocation2 + $0x4] sm:$0xf]
        %v275 = vld [vmem:[%s225] sm:$0xf]
        %v276 = vld [vmem:[%s225 + $0x4] sm:$0xf]
        %v277 = vld [vmem:[%s225 + $0x8] sm:$0xf]
        %v278 = vld [vmem:[%s225 + $0xc] sm:$0xf]
        %v279 = vld [vmem:[%s225 + $0x10] sm:$0xf]
        %v280 = vld [vmem:[%s225 + $0x14] sm:$0xf]
        %v281 = vld [vmem:[%s225 + $0x18] sm:$0xf]
        %v282 = vld [vmem:[%s225 + $0x1c] sm:$0xf]
        %v283 = vld [vmem:[%s225 + $0x20] sm:$0xf]
        %v284 = vld [vmem:[%s225 + $0x24] sm:$0xf]
        %v285 = vld [vmem:[%s225 + $0x28] sm:$0xf]
        %v286 = vld [vmem:[%s225 + $0x2c] sm:$0xf]
        %v287 = vld [vmem:[%s225 + $0x30] sm:$0xf]
        %v288 = vld [vmem:[%s225 + $0x34] sm:$0xf]
        %v289 = vld [vmem:[%s225 + $0x38] sm:$0xf]
        %v290 = vld [vmem:[%s225 + $0x3c] sm:$0xf]
        %v293 = vunpack.c.l.b16 %v273
        %v294 = vunpack.c.l.b16 %v274
        %v295 = vpack.c.b16 %v294, %v293
        %v313 = vunpack.c.l.b16 %v275
        %v314 = vunpack.c.l.b16 %v276
        %v315 = vunpack.c.l.b16 %v277
        %v316 = vunpack.c.l.b16 %v278
        %v317 = vunpack.c.l.b16 %v279
        %v318 = vunpack.c.l.b16 %v280
        %v319 = vunpack.c.l.b16 %v281
        %v320 = vunpack.c.l.b16 %v282
        %v321 = vunpack.c.l.b16 %v283
        %v322 = vunpack.c.l.b16 %v284
        %v323 = vunpack.c.l.b16 %v285
        %v324 = vunpack.c.l.b16 %v286
        %v325 = vunpack.c.l.b16 %v287
        %v326 = vunpack.c.l.b16 %v288
        %v327 = vunpack.c.l.b16 %v289
        %v328 = vunpack.c.l.b16 %v290
        %v329 = vpack.c.b16 %v314, %v313
        %v330 = vpack.c.b16 %v316, %v315
        %v331 = vpack.c.b16 %v318, %v317
        %v332 = vpack.c.b16 %v320, %v319
        %v333 = vpack.c.b16 %v322, %v321
        %v334 = vpack.c.b16 %v324, %v323
        %v335 = vpack.c.b16 %v326, %v325
        %v336 = vpack.c.b16 %v328, %v327
        %345 = vmatprep.subr.bf16.mxu0 0
        %346 = vmatpush1.bf16.msra.mxu0 %v329
        %347 = vmatprep.subr.bf16.mxu0 0
        %348 = vmatpush1.bf16.msra.mxu0 %v330
        %349 = vmatprep.subr.bf16.mxu0 0
        %350 = vmatpush1.bf16.msra.mxu0 %v331
        %351 = vmatprep.subr.bf16.mxu0 0
        %352 = vmatpush1.bf16.msra.mxu0 %v332
        %353 = vmatprep.subr.bf16.mxu0 0
        %354 = vmatpush1.bf16.msra.mxu0 %v333
        %355 = vmatprep.subr.bf16.mxu0 0
        %356 = vmatpush1.bf16.msra.mxu0 %v334
        %357 = vmatprep.subr.bf16.mxu0 0
        %358 = vmatpush1.bf16.msra.mxu0 %v335
        %359 = vmatprep.subr.bf16.mxu0 0
        %360 = vmatpush1.bf16.msra.mxu0 %v336
        %361 = vmatprep.subr.bf16.mxu0 0
        %362 = vmatpush1.bf16.msra.mxu0 0
        %363 = vmatprep.subr.bf16.mxu0 0
        %364 = vmatpush1.bf16.msra.mxu0 0
        %365 = vmatprep.subr.bf16.mxu0 0
        %366 = vmatpush1.bf16.msra.mxu0 0
        %367 = vmatprep.subr.bf16.mxu0 0
        %368 = vmatpush1.bf16.msra.mxu0 0
        %369 = vmatprep.subr.bf16.mxu0 0
        %370 = vmatpush1.bf16.msra.mxu0 0
        %371 = vmatprep.subr.bf16.mxu0 0
        %372 = vmatpush1.bf16.msra.mxu0 0
        %373 = vmatprep.subr.bf16.mxu0 0
        %374 = vmatpush1.bf16.msra.mxu0 0
        %375 = vmatprep.subr.bf16.mxu0 0
        %376 = vmatpush1.bf16.msra.mxu0 0
        %377 = vmatprep.mubr.bf16.mxu0 0
        %378 = vmatmul.mubr.bf16.gmra.mrb[0].mxu0 %v295
        %v379 = vpop.f32.mrb[0].mxu0
        %v380 = vadd.f32 0.0, %v379
        %v381 = vpop.f32.mrb[0].mxu0
        %v382 = vpop.f32.mrb[0].mxu0
        %v383 = vadd.f32 0.0, %v382
        %v384 = vpop.f32.mrb[0].mxu0
        %385 = vdwg.mxu0
        %v386 = vadd.f32 %v271, %v380
        %v387 = vadd.f32 %v272, %v383
        %388 = vst [vmem:[%s250] sm:$0xff] %v386
        %389 = vst [vmem:[%s250 + $0x8] sm:$0xff] %v387
        %s390 = sand.u32 %s132, 1
        %s391 = scalar_lea.sflag [#allocation4], %s390
        %s392 = sand.u32 %s132, 1
        %s393 = smul.addr %s392, 16
        %s394 = scalar_lea.vmem [#allocation7], %s393
        // Predicated region
        $region45: #{tpu_custom_call.1} parent=31 // pred_check
          %p395 = pneg %p142
        $region46: #{tpu_custom_call.1} parent=31 // pred_check_branch
          %397 = sbr.rel (%p395) target = $region48
        $region47: #{tpu_custom_call.1} parent=31 // pred_region
          %s398 = smul.u32 2, %s26
          %s400 = ssub.s32 256, 256
          %401 = vsyncadd %s391, %s400
          %s402 = smul.addr %s398, 2
          %s403 = sadd.s32 %s27, %s402
          %s404 = smul.addr %s403, 128
          %s405 = scalar_lea.hbm %s3, %s404
          %s406 = sshll.u32 %s394, 4
          %s407 = int_to_ptr.vmem [resolvable:$true] %s406
          %412 = dma.vmem_to_hbm [thread:$0]  %s407, 256, %s405, %s391, 128, 256, 8
        $region48: #{tpu_custom_call.1} parent=31 // pred_fallthru
          _
      $region32: #{tpu_custom_call.1} parent=5 // pred_fallthru
        _
      %p413 = scmp.le.s32.totalorder 2, %s16
      // Predicated region
      $region49: #{tpu_custom_call.1} parent=5 // pred_check
        %p414 = pneg %p413
      $region50: #{tpu_custom_call.1} parent=5 // pred_check_branch
        %416 = sbr.rel (%p414) target = $region52
      $region51: #{tpu_custom_call.1} parent=5 // pred_region
        %s417 = ssub.s32 %s16, 2
        // Predicated region
        $region53: #{tpu_custom_call.1} parent=51 // pred_check
          %p418 = pneg %p148
        $region54: #{tpu_custom_call.1} parent=51 // pred_check_branch
          %420 = sbr.rel (%p418) target = $region56
        $region55: #{tpu_custom_call.1} parent=51 // pred_region
          %s421 = sand.u32 %s133, 1
          %s422 = scalar_lea.sflag [#allocation4], %s421
          %s423 = sand.u32 %s133, 1
          %s424 = smul.addr %s423, 16
          %s425 = scalar_lea.vmem [#allocation7], %s424
          %426 = dma.done %s422, 256
        $region56: #{tpu_custom_call.1} parent=51 // pred_fallthru
          _
      $region52: #{tpu_custom_call.1} parent=5 // pred_fallthru
        _
    $region6: #{tpu_custom_call.1} parent=1 // loop_footer
      %s20 = sadd.s32 1, %s16
    $region7: #{tpu_custom_call.1} parent=1 // loop_footer_branch
      %15 = sbr.rel target = $region3
    $region8: #{tpu_custom_call.1} parent=1 // loop_exit
      _
    %427 = vsyncpa [#allocation3], 1
    %s428 = scalar_lea.sflag [#allocation3], 1
    %429 = vsyncpa %s428, 1
    %430 = vsyncpa [#allocation6], 1
    %s431 = scalar_lea.sflag [#allocation6], 1
    %432 = vsyncpa %s431, 1
    %433 = vsyncpa [#allocation4], 1
    %s434 = scalar_lea.sflag [#allocation4], 1
    %435 = vsyncpa %s434, 1

</llo_original>
